<compile_context>
chip_gen: v5e
topology: v5e:2x2
jax: 0.10.0
libtpu: 0.0.40
codegen_flags: <defaults>
</compile_context>

<pallas_src>
import functools

import jax
import jax.numpy as jnp
import numpy as np
from jax.experimental import pallas as pl
from jax.experimental.pallas import tpu as pltpu

C_IN = 12   # self.C
F_MID = 6   # self.f


def _spat_apnba_kernel(x_ref, w_ref, b_ref, o_ref):
    # x_ref: (Bt, C, HW)  -- HW on the lane axis (lane-dense)
    # w_ref: (3f, C)  rows [w11; w21; w31 * (1/HW)]  (mean factor pre-folded)
    # b_ref: (3f, 1)  rows [b11; b21; b31]
    # o_ref: (Bt, C, 1)
    bt, c, hw = x_ref.shape
    inv_hw = 1.0 / hw

    w_all = w_ref[...]
    b_all = b_ref[...]
    w_kq = w_all[: 2 * F_MID]          # (2f, C)  fused conv11+conv21 weights
    w_31 = w_all[2 * F_MID:]           # (f, C)   already scaled by 1/HW
    b_kq = b_all[: 2 * F_MID]          # (2f, 1)
    b_31 = b_all[2 * F_MID:]           # (f, 1)

    # Static unroll over the (small) per-block batch; elements are independent.
    for b in range(bt):
        x = x_ref[b]                   # (C, HW)

        # Fused k/q 1x1 convs: one (2f, C) @ (C, HW) MXU pass, lane-dense out.
        pre = jnp.dot(w_kq, x, preferred_element_type=jnp.float32) + b_kq
        kq = pre[:F_MID] * pre[F_MID:]                              # (f, HW)

        # conv31 branch folded: avg-pool commutes with the 1x1 conv; the 1/HW
        # factor lives in w_31, so only a lane-reduce + tiny dot remain.
        xsum = jnp.sum(x, axis=1, keepdims=True)                    # (C, 1)
        vpre = jnp.dot(w_31, xsum,
                       preferred_element_type=jnp.float32) + b_31   # (f, 1)

        # Softmax over the f channels (nn.Softmax on (B,f,1,1) -> dim=1).
        vmax = jnp.max(vpre, axis=0, keepdims=True)
        e = jnp.exp(vpre - vmax)
        v = e / jnp.sum(e, axis=0, keepdims=True)                   # (f, 1)

        # x31 = v^T @ kq as a lane-dense broadcast-MAC: (f,1)*(f,HW) -> (1,HW)
        x31 = jnp.sum(v * kq, axis=0, keepdims=True)                # (1, HW)
        attn = jax.nn.sigmoid(x31)                                  # (1, HW)

        # Global average pool of attn * X  -> (C, 1)
        o_ref[b] = jnp.sum(attn * x, axis=1, keepdims=True) * inv_hw


@functools.partial(jax.jit, static_argnames=("h", "w"))
def spat_apnba_forward(x_nchw, w11, b11, w21, b21, w31, b31, *, h, w):
    """x_nchw: (B, 12, h, w) float32.  Returns (B, 12, 1, 1) like PyTorch."""
    bsz = x_nchw.shape[0]
    hw = h * w

    # NCHW -> (B, C, HW) is a pure reshape (no transpose, no extra HBM pass).
    x = x_nchw.reshape(bsz, C_IN, hw).astype(jnp.float32)

    # Pack all 1x1-conv weights into one (3f, C) block and biases into (3f, 1);
    # fold the 1/HW mean normalization into the conv31 weights.
    def wmat(wgt):
        return wgt.reshape(F_MID, C_IN).astype(jnp.float32)

    w_all = jnp.concatenate(
        [wmat(w11), wmat(w21), wmat(w31) * (1.0 / hw)], axis=0)         # (18, 12)
    b_all = jnp.concatenate(
        [b11.reshape(-1), b21.reshape(-1), b31.reshape(-1)]
    ).reshape(3 * F_MID, 1).astype(jnp.float32)                         # (18, 1)

    # Batch several elements per grid step to amortize per-step overhead at
    # small HW, while keeping the X block within a VMEM budget.
    block_budget_bytes = 2 * 2**20           # per X block (Pallas double-buffers)
    bt_unroll_cap = 8                        # cap the static in-kernel unroll
    per_batch_bytes = C_IN * hw * 4
    bt = max(1, min(bsz, bt_unroll_cap,
                    max(1, block_budget_bytes // per_batch_bytes)))
    grid = (pl.cdiv(bsz, bt),)

    x_block_bytes = bt * per_batch_bytes
    vmem_limit = int(min(48 * 2**20,
                         max(16 * 2**20, 8 * x_block_bytes + 2 * 2**20)))

    out = pl.pallas_call(
        _spat_apnba_kernel,
        out_shape=jax.ShapeDtypeStruct((bsz, C_IN, 1), jnp.float32),
        grid_spec=pltpu.PrefetchScalarGridSpec(
            num_scalar_prefetch=0,
            grid=grid,
            in_specs=[
                pl.BlockSpec((bt, C_IN, hw), lambda i: (i, 0, 0)),
                pl.BlockSpec((3 * F_MID, C_IN), lambda i: (0, 0)),
                pl.BlockSpec((3 * F_MID, 1), lambda i: (0, 0)),
            ],
            out_specs=pl.BlockSpec((bt, C_IN, 1), lambda i: (i, 0, 0)),
        ),
        compiler_params=pltpu.CompilerParams(
            dimension_semantics=("parallel",),
            vmem_limit_bytes=vmem_limit),
    )(x, w_all, b_all)

    return out.reshape(bsz, C_IN, 1, 1)


def _reference_forward(x_nchw, w11, b11, w21, b21, w31, b31, h, w):
    """Pure-JAX reference mirroring the PyTorch forward (for verification)."""
    bsz = x_nchw.shape[0]

    def conv1x1(x, wgt, bias):  # x: (B,C,H,W), wgt: (f,C,1,1)
        y = jnp.einsum('bchw,fc->bfhw', x, wgt.reshape(F_MID, C_IN))
        return y + bias.reshape(1, F_MID, 1, 1)

    k = conv1x1(x_nchw, w11, b11)
    q = conv1x1(x_nchw, w21, b21)
    kq = (k * q).reshape(bsz, F_MID, h * w)
    v = conv1x1(x_nchw, w31, b31).mean(axis=(2, 3), keepdims=True)   # (B,f,1,1)
    v = jax.nn.softmax(v, axis=1).reshape(bsz, 1, F_MID)
    x31 = jnp.einsum('bik,bkj->bij', v, kq).reshape(bsz, 1, h, w)
    out = jax.nn.sigmoid(x31) * x_nchw
    return out.mean(axis=(2, 3), keepdims=True)                      # (B,C,1,1)


if __name__ == "__main__":
    key = jax.random.PRNGKey(0)
    B, H, W = 2, 16, 16
    keys = jax.random.split(key, 7)

    X = jax.random.normal(keys[0], (B, C_IN, H, W), dtype=jnp.float32)

    # Deterministic parameter init (uniform in +-1/sqrt(fan_in), fan_in = C_IN).
    bound = 1.0 / np.sqrt(C_IN)

    def init_w(k):
        return jax.random.uniform(k, (F_MID, C_IN, 1, 1), jnp.float32, -bound, bound)

    def init_b(k):
        return jax.random.uniform(k, (F_MID,), jnp.float32, -bound, bound)

    W11, B11 = init_w(keys[1]), init_b(keys[2])
    W21, B21 = init_w(keys[3]), init_b(keys[4])
    W31, B31 = init_w(keys[5]), init_b(keys[6])

    out = spat_apnba_forward(X, W11, B11, W21, B21, W31, B31, h=H, w=W)
    out = jax.block_until_ready(out)

    ref = _reference_forward(X, W11, B11, W21, B21, W31, B31, H, W)
    np.testing.assert_allclose(np.asarray(out), np.asarray(ref),
                               rtol=1e-5, atol=1e-5)

    print("KERNEL_OK")
</pallas_src>

<mosaic_0001>
module attributes {stable_mosaic.version = 11 : i64} {
  func.func @_spat_apnba_kernel(%arg0: i32, %arg1: memref<2x12x256xf32, #tpu.memory_space<vmem>>, %arg2: memref<18x12xf32, #tpu.memory_space<vmem>>, %arg3: memref<18x1xf32, #tpu.memory_space<vmem>>, %arg4: memref<2x12x1xf32, #tpu.memory_space<vmem>>) attributes {dimension_semantics = [#tpu.dimension_semantics<parallel>], iteration_bounds = array<i64: 1>, scalar_prefetch = 0 : i64, scratch_operands = 0 : i64, tpu.core_type = #tpu.core_type<tc>, window_params = [{transform_indices = @transform_0, window_bounds = array<i64: 2, 12, 256>}, {pipeline_mode = #tpu.pipeline_mode<synchronous>, transform_indices = @transform_1, window_bounds = array<i64: 18, 12>}, {pipeline_mode = #tpu.pipeline_mode<synchronous>, transform_indices = @transform_2, window_bounds = array<i64: 18, 1>}, {transform_indices = @transform_3, window_bounds = array<i64: 2, 12, 1>}]} {
    %c0 = arith.constant 0 : index
    %c0_0 = arith.constant 0 : index
    %0 = vector.load %arg2[%c0, %c0_0] : memref<18x12xf32, #tpu.memory_space<vmem>>, vector<18x12xf32>
    %c0_1 = arith.constant 0 : index
    %c0_2 = arith.constant 0 : index
    %1 = vector.load %arg3[%c0_1, %c0_2] : memref<18x1xf32, #tpu.memory_space<vmem>>, vector<18x1xf32>
    %2 = vector.extract_strided_slice %0 {offsets = [0, 0], sizes = [12, 12], strides = [1, 1]} : vector<18x12xf32> to vector<12x12xf32>
    %3 = vector.extract_strided_slice %0 {offsets = [12, 0], sizes = [6, 12], strides = [1, 1]} : vector<18x12xf32> to vector<6x12xf32>
    %4 = vector.extract_strided_slice %1 {offsets = [0, 0], sizes = [12, 1], strides = [1, 1]} : vector<18x1xf32> to vector<12x1xf32>
    %5 = vector.extract_strided_slice %1 {offsets = [12, 0], sizes = [6, 1], strides = [1, 1]} : vector<18x1xf32> to vector<6x1xf32>
    %c0_3 = arith.constant 0 : index
    %c0_4 = arith.constant 0 : index
    %c0_5 = arith.constant 0 : index
    %6 = vector.load %arg1[%c0_3, %c0_4, %c0_5] : memref<2x12x256xf32, #tpu.memory_space<vmem>>, vector<1x12x256xf32>
    %7 = vector.shape_cast %6 : vector<1x12x256xf32> to vector<12x256xf32>
    %cst = arith.constant dense<0.000000e+00> : vector<12x256xf32>
    %8 = tpu.matmul %2, %7, %cst {dimension_numbers = #tpu.dot_dimension_numbers<[1], [0], [0], [1], [0, 0, 1, 1], [], []>} : vector<12x12xf32>, vector<12x256xf32>, vector<12x256xf32> -> vector<12x256xf32>
    %9 = vector.broadcast %4 : vector<12x1xf32> to vector<12x256xf32>
    %10 = arith.addf %8, %9 : vector<12x256xf32>
    %11 = vector.extract_strided_slice %10 {offsets = [0, 0], sizes = [6, 256], strides = [1, 1]} : vector<12x256xf32> to vector<6x256xf32>
    %12 = vector.extract_strided_slice %10 {offsets = [6, 0], sizes = [6, 256], strides = [1, 1]} : vector<12x256xf32> to vector<6x256xf32>
    %13 = arith.mulf %11, %12 : vector<6x256xf32>
    %cst_6 = arith.constant dense<0.000000e+00> : vector<12xf32>
    %14 = vector.multi_reduction <add>, %7, %cst_6 [1] : vector<12x256xf32> to vector<12xf32>
    %15 = vector.shape_cast %14 : vector<12xf32> to vector<12x1xf32>
    %cst_7 = arith.constant dense<0.000000e+00> : vector<6x1xf32>
    %16 = tpu.matmul %3, %15, %cst_7 {dimension_numbers = #tpu.dot_dimension_numbers<[1], [0], [0], [1], [0, 0, 1, 1], [], []>} : vector<6x12xf32>, vector<12x1xf32>, vector<6x1xf32> -> vector<6x1xf32>
    %17 = arith.addf %16, %5 : vector<6x1xf32>
    %cst_8 = arith.constant dense<0xFF800000> : vector<1xf32>
    %18 = vector.multi_reduction <maximumf>, %17, %cst_8 [0] : vector<6x1xf32> to vector<1xf32>
    %19 = vector.shape_cast %18 : vector<1xf32> to vector<1x1xf32>
    %20 = vector.broadcast %19 : vector<1x1xf32> to vector<6x1xf32>
    %21 = arith.subf %17, %20 : vector<6x1xf32>
    %22 = math.exp %21 : vector<6x1xf32>
    %cst_9 = arith.constant dense<0.000000e+00> : vector<1xf32>
    %23 = vector.multi_reduction <add>, %22, %cst_9 [0] : vector<6x1xf32> to vector<1xf32>
    %24 = vector.shape_cast %23 : vector<1xf32> to vector<1x1xf32>
    %25 = vector.broadcast %24 : vector<1x1xf32> to vector<6x1xf32>
    %26 = arith.divf %22, %25 : vector<6x1xf32>
    %27 = vector.broadcast %26 : vector<6x1xf32> to vector<6x256xf32>
    %28 = arith.mulf %27, %13 : vector<6x256xf32>
    %cst_10 = arith.constant dense<0.000000e+00> : vector<256xf32>
    %29 = vector.multi_reduction <add>, %28, %cst_10 [0] : vector<6x256xf32> to vector<256xf32>
    %30 = vector.shape_cast %29 : vector<256xf32> to vector<1x256xf32>
    %31 = arith.negf %30 : vector<1x256xf32>
    %32 = math.exp %31 : vector<1x256xf32>
    %cst_11 = arith.constant 1.000000e+00 : f32
    %33 = vector.broadcast %cst_11 : f32 to vector<1x256xf32>
    %34 = arith.addf %33, %32 : vector<1x256xf32>
    %35 = arith.divf %33, %34 : vector<1x256xf32>
    %36 = vector.broadcast %35 : vector<1x256xf32> to vector<12x256xf32>
    %37 = arith.mulf %36, %7 : vector<12x256xf32>
    %cst_12 = arith.constant dense<0.000000e+00> : vector<12xf32>
    %38 = vector.multi_reduction <add>, %37, %cst_12 [1] : vector<12x256xf32> to vector<12xf32>
    %39 = vector.shape_cast %38 : vector<12xf32> to vector<12x1xf32>
    %cst_13 = arith.constant 3.906250e-03 : f32
    %40 = vector.broadcast %cst_13 : f32 to vector<12x1xf32>
    %41 = arith.mulf %39, %40 : vector<12x1xf32>
    %c0_14 = arith.constant 0 : index
    %c0_15 = arith.constant 0 : index
    %c0_16 = arith.constant 0 : index
    %42 = vector.load %arg4[%c0_14, %c0_15, %c0_16] : memref<2x12x1xf32, #tpu.memory_space<vmem>>, vector<1x12x1xf32>
    %43 = vector.shape_cast %42 : vector<1x12x1xf32> to vector<12x1xf32>
    %44 = vector.shape_cast %41 : vector<12x1xf32> to vector<1x12x1xf32>
    tpu.vector_store %arg4[%c0_14, %c0_15, %c0_16], %44 {strides = array<i32>} : memref<2x12x1xf32, #tpu.memory_space<vmem>>, vector<1x12x1xf32>,
    %c1 = arith.constant 1 : index
    %c0_17 = arith.constant 0 : index
    %c0_18 = arith.constant 0 : index
    %45 = vector.load %arg1[%c1, %c0_17, %c0_18] : memref<2x12x256xf32, #tpu.memory_space<vmem>>, vector<1x12x256xf32>
    %46 = vector.shape_cast %45 : vector<1x12x256xf32> to vector<12x256xf32>
    %cst_19 = arith.constant dense<0.000000e+00> : vector<12x256xf32>
    %47 = tpu.matmul %2, %46, %cst_19 {dimension_numbers = #tpu.dot_dimension_numbers<[1], [0], [0], [1], [0, 0, 1, 1], [], []>} : vector<12x12xf32>, vector<12x256xf32>, vector<12x256xf32> -> vector<12x256xf32>
    %48 = vector.broadcast %4 : vector<12x1xf32> to vector<12x256xf32>
    %49 = arith.addf %47, %48 : vector<12x256xf32>
    %50 = vector.extract_strided_slice %49 {offsets = [0, 0], sizes = [6, 256], strides = [1, 1]} : vector<12x256xf32> to vector<6x256xf32>
    %51 = vector.extract_strided_slice %49 {offsets = [6, 0], sizes = [6, 256], strides = [1, 1]} : vector<12x256xf32> to vector<6x256xf32>
    %52 = arith.mulf %50, %51 : vector<6x256xf32>
    %cst_20 = arith.constant dense<0.000000e+00> : vector<12xf32>
    %53 = vector.multi_reduction <add>, %46, %cst_20 [1] : vector<12x256xf32> to vector<12xf32>
    %54 = vector.shape_cast %53 : vector<12xf32> to vector<12x1xf32>
    %cst_21 = arith.constant dense<0.000000e+00> : vector<6x1xf32>
    %55 = tpu.matmul %3, %54, %cst_21 {dimension_numbers = #tpu.dot_dimension_numbers<[1], [0], [0], [1], [0, 0, 1, 1], [], []>} : vector<6x12xf32>, vector<12x1xf32>, vector<6x1xf32> -> vector<6x1xf32>
    %56 = arith.addf %55, %5 : vector<6x1xf32>
    %cst_22 = arith.constant dense<0xFF800000> : vector<1xf32>
    %57 = vector.multi_reduction <maximumf>, %56, %cst_22 [0] : vector<6x1xf32> to vector<1xf32>
    %58 = vector.shape_cast %57 : vector<1xf32> to vector<1x1xf32>
    %59 = vector.broadcast %58 : vector<1x1xf32> to vector<6x1xf32>
    %60 = arith.subf %56, %59 : vector<6x1xf32>
    %61 = math.exp %60 : vector<6x1xf32>
    %cst_23 = arith.constant dense<0.000000e+00> : vector<1xf32>
    %62 = vector.multi_reduction <add>, %61, %cst_23 [0] : vector<6x1xf32> to vector<1xf32>
    %63 = vector.shape_cast %62 : vector<1xf32> to vector<1x1xf32>
    %64 = vector.broadcast %63 : vector<1x1xf32> to vector<6x1xf32>
    %65 = arith.divf %61, %64 : vector<6x1xf32>
    %66 = vector.broadcast %65 : vector<6x1xf32> to vector<6x256xf32>
    %67 = arith.mulf %66, %52 : vector<6x256xf32>
    %cst_24 = arith.constant dense<0.000000e+00> : vector<256xf32>
    %68 = vector.multi_reduction <add>, %67, %cst_24 [0] : vector<6x256xf32> to vector<256xf32>
    %69 = vector.shape_cast %68 : vector<256xf32> to vector<1x256xf32>
    %70 = arith.negf %69 : vector<1x256xf32>
    %71 = math.exp %70 : vector<1x256xf32>
    %cst_25 = arith.constant 1.000000e+00 : f32
    %72 = vector.broadcast %cst_25 : f32 to vector<1x256xf32>
    %73 = arith.addf %72, %71 : vector<1x256xf32>
    %74 = arith.divf %72, %73 : vector<1x256xf32>
    %75 = vector.broadcast %74 : vector<1x256xf32> to vector<12x256xf32>
    %76 = arith.mulf %75, %46 : vector<12x256xf32>
    %cst_26 = arith.constant dense<0.000000e+00> : vector<12xf32>
    %77 = vector.multi_reduction <add>, %76, %cst_26 [1] : vector<12x256xf32> to vector<12xf32>
    %78 = vector.shape_cast %77 : vector<12xf32> to vector<12x1xf32>
    %cst_27 = arith.constant 3.906250e-03 : f32
    %79 = vector.broadcast %cst_27 : f32 to vector<12x1xf32>
    %80 = arith.mulf %78, %79 : vector<12x1xf32>
    %c1_28 = arith.constant 1 : index
    %c0_29 = arith.constant 0 : index
    %c0_30 = arith.constant 0 : index
    %81 = vector.load %arg4[%c1_28, %c0_29, %c0_30] : memref<2x12x1xf32, #tpu.memory_space<vmem>>, vector<1x12x1xf32>
    %82 = vector.shape_cast %81 : vector<1x12x1xf32> to vector<12x1xf32>
    %83 = vector.shape_cast %80 : vector<12x1xf32> to vector<1x12x1xf32>
    tpu.vector_store %arg4[%c1_28, %c0_29, %c0_30], %83 {strides = array<i32>} : memref<2x12x1xf32, #tpu.memory_space<vmem>>, vector<1x12x1xf32>,
    return
  }
  func.func @transform_0(%arg0: i32) -> (i32, i32, i32) {
    %c0_i32 = arith.constant 0 : i32
    %c0_i32_0 = arith.constant 0 : i32
    %c0_i32_1 = arith.constant 0 : i32
    return %arg0, %c0_i32, %c0_i32_0 : i32, i32, i32
  }
  func.func @transform_1(%arg0: i32) -> (i32, i32) {
    %c0_i32 = arith.constant 0 : i32
    %c0_i32_0 = arith.constant 0 : i32
    %c0_i32_1 = arith.constant 0 : i32
    return %c0_i32, %c0_i32_0 : i32, i32
  }
  func.func @transform_2(%arg0: i32) -> (i32, i32) {
    %c0_i32 = arith.constant 0 : i32
    %c0_i32_0 = arith.constant 0 : i32
    %c0_i32_1 = arith.constant 0 : i32
    return %c0_i32, %c0_i32_0 : i32, i32
  }
  func.func @transform_3(%arg0: i32) -> (i32, i32, i32) {
    %c0_i32 = arith.constant 0 : i32
    %c0_i32_0 = arith.constant 0 : i32
    %c0_i32_1 = arith.constant 0 : i32
    return %arg0, %c0_i32, %c0_i32_0 : i32, i32, i32
  }
}

</mosaic_0001>

<llo_original>
// kernel: spat_apnba_forward.1
$region0: #{spat_apnba_forward.1}
  #allocation0 [shape = 'u32[]', space=smem, size = 0x4, offset = 0x4, fixed_abs, tag = 'smem constant byte address 0x4 - core index']
  #allocation1 [shape = 'u32[72,128]{1,0:T(1,128)}', space=vmem, size = 0x9000, scoped, tag = 'internal scratch']
  %s0 = inlined_call_operand.vmem [shape: f32[2,12,256], index: 0, kind: input, shape index: {}]
  %s1 = inlined_call_operand.vmem [shape: f32[18,12], index: 1, kind: input, shape index: {}]
  %s2 = inlined_call_operand.vmem [shape: f32[18,1], index: 2, kind: input, shape index: {}]
  %s3 = inlined_call_operand.vmem [shape: f32[2,12,1], index: 3, kind: output, shape index: {}]
  %s4 = sld [smem:[#allocation0]]
  $region22: #{spat_apnba_forward.1} parent=0
    _
  %s6 = ssub.s32 1, %s4
  %s7 = scalar_select 0, %s6, %s4
  // Predicated region
  $region2: #{spat_apnba_forward.1} parent=0 // pred_check
    _
  $region3: #{spat_apnba_forward.1} parent=0 // pred_check_branch
    %9 = sbr.rel (0) target = $region5
  $region4: #{spat_apnba_forward.1} parent=0 // pred_region
    _
  $region5: #{spat_apnba_forward.1} parent=0 // pred_fallthru
    _
  // Predicated region
  $region6: #{spat_apnba_forward.1} parent=0 // pred_check
    _
  $region7: #{spat_apnba_forward.1} parent=0 // pred_check_branch
    %11 = sbr.rel (0) target = $region9
  $region8: #{spat_apnba_forward.1} parent=0 // pred_region
    _
  $region9: #{spat_apnba_forward.1} parent=0 // pred_fallthru
    _
  // Predicated region
  $region10: #{spat_apnba_forward.1} parent=0 // pred_check
    _
  $region11: #{spat_apnba_forward.1} parent=0 // pred_check_branch
    %13 = sbr.rel (0) target = $region13
  $region12: #{spat_apnba_forward.1} parent=0 // pred_region
    _
  $region13: #{spat_apnba_forward.1} parent=0 // pred_fallthru
    _
  %v14 = vld [vmem:[%s1] sm:$0xff]
  %v15 = vld [vmem:[%s1 + $0x8] sm:$0xff]
  %v16 = vld [vmem:[%s1 + $0x10] sm:$0x3]
  %v17 = vld [vmem:[%s2] sm:$0xff]
  %v18 = vld [vmem:[%s2 + $0x8] sm:$0xff]
  %v19 = vld [vmem:[%s2 + $0x10] sm:$0x3]
  %v20 = vld [vmem:[%s0] sm:$0xff]
  %v21 = vld [vmem:[%s0 + $0x8] sm:$0xff]
  %v22 = vld [vmem:[%s0 + $0x10] sm:$0xf]
  %v23 = vld [vmem:[%s0 + $0x18] sm:$0xf]
  %25 = vset.pattern.permute.xlu0 0
  %26 = vperm.xlu0 %25, %v17
  %v27 = vpop.permute.xlu0 %26
  %30 = vset.pattern.permute.xlu0 0
  %31 = vperm.xlu0 %30, %v18
  %v32 = vpop.permute.xlu0 %31
  %vm34 = vcmask 97280
  %v36 = vsel %vm34, %v14, 0
  %v39 = vsel %vm34, %v15, 0
  %vm41 = vcmask 1043456
  %v43 = vsel %vm41, %v22, 0
  %v46 = vsel %vm41, %v23, 0
  %48 = vmatpush.msra.mxu0 0.0
  %49 = vmatpush.msra.mxu0 0.0
  %50 = vmatpush.msra.mxu0 0.0
  %51 = vmatpush.msra.mxu0 0.0
  %52 = vmatpush.msra.mxu0 0.0
  %53 = vmatpush.msra.mxu0 0.0
  %54 = vmatpush.msra.mxu0 0.0
  %55 = vmatpush.msra.mxu0 0.0
  %56 = vmatpush.msra.mxu0 0.0
  %57 = vmatpush.msra.mxu0 0.0
  %58 = vmatpush.msra.mxu0 0.0
  %59 = vmatpush.msra.mxu0 0.0
  %60 = vmatpush.msra.mxu0 0.0
  %61 = vmatpush.msra.mxu0 0.0
  %62 = vmatpush.msra.mxu0 %v43
  %63 = vmatpush.msra.mxu0 %v20
  %64 = vmatmul.f32.gmra.mxu0 %v36
  %v65 = vpop.f32.mrf.mxu0
  %v66 = vadd.f32 %v27, %v65
  %67 = vmatmul.f32.gmra.mxu0 %v39
  %v68 = vpop.f32.mrf.mxu0
  %v69 = vadd.f32 %v32, %v68
  %70 = vdwg.mxu0
  %71 = vmatpush.msra.mxu0 0.0
  %72 = vmatpush.msra.mxu0 0.0
  %73 = vmatpush.msra.mxu0 0.0
  %74 = vmatpush.msra.mxu0 0.0
  %75 = vmatpush.msra.mxu0 0.0
  %76 = vmatpush.msra.mxu0 0.0
  %77 = vmatpush.msra.mxu0 0.0
  %78 = vmatpush.msra.mxu0 0.0
  %79 = vmatpush.msra.mxu0 0.0
  %80 = vmatpush.msra.mxu0 0.0
  %81 = vmatpush.msra.mxu0 0.0
  %82 = vmatpush.msra.mxu0 0.0
  %83 = vmatpush.msra.mxu0 0.0
  %84 = vmatpush.msra.mxu0 0.0
  %85 = vmatpush.msra.mxu0 %v46
  %86 = vmatpush.msra.mxu0 %v21
  %87 = vmatmul.f32.gmra.mxu0 %v36
  %v88 = vpop.f32.mrf.mxu0
  %v89 = vadd.f32 %v27, %v88
  %90 = vmatmul.f32.gmra.mxu0 %v39
  %v91 = vpop.f32.mrf.mxu0
  %v92 = vadd.f32 %v32, %v91
  %93 = vdwg.mxu0
  %vm98 = vcmask 1041408
  %v99 = vrot.slane %v66, 6
  %v100 = vrot.slane %v69, 6
  %v101 = vsel %vm98, %v99, %v100
  %v102 = vrot.slane %v89, 6
  %v103 = vrot.slane %v92, 6
  %v104 = vsel %vm98, %v102, %v103
  %v107 = vmul.f32 %v66, %v101
  %v108 = vmul.f32 %v89, %v104
  %v109 = vadd.f32 %v20, %v21
  %110 = vadd.xlane.f32.xlu0 %v109
  %v111 = vpop.xlane.xlu0 %110
  %v112 = vsel %vm41, %v22, 0.0
  %v113 = vsel %vm41, %v23, 0.0
  %v114 = vadd.f32 %v112, %v113
  %115 = vadd.xlane.f32.xlu0 %v114
  %v116 = vpop.xlane.xlu0 %115
  %v118 = vrot.slane %v15, 4
  %v119 = vrot.slane %v16, 4
  %v120 = vsel %vm41, %v118, %v119
  %v122 = vrot.slane %v18, 4
  %v123 = vrot.slane %v19, 4
  %v124 = vsel %vm41, %v122, %v123
  %v126 = vsel %vm34, %v120, 0
  %v129 = vsel %vm41, %v116, 0
  %131 = vmatpush.msra.mxu0 0.0
  %132 = vmatpush.msra.mxu0 0.0
  %133 = vmatpush.msra.mxu0 0.0
  %134 = vmatpush.msra.mxu0 0.0
  %135 = vmatpush.msra.mxu0 0.0
  %136 = vmatpush.msra.mxu0 0.0
  %137 = vmatpush.msra.mxu0 0.0
  %138 = vmatpush.msra.mxu0 0.0
  %139 = vmatpush.msra.mxu0 0.0
  %140 = vmatpush.msra.mxu0 0.0
  %141 = vmatpush.msra.mxu0 0.0
  %142 = vmatpush.msra.mxu0 0.0
  %143 = vmatpush.msra.mxu0 0.0
  %144 = vmatpush.msra.mxu0 0.0
  %145 = vmatpush.msra.mxu0 %v129
  %146 = vmatpush.msra.mxu0 %v111
  %147 = vmatmul.f32.gmra.mxu0 %v126
  %v148 = vpop.f32.mrf.mxu0
  %v149 = vadd.f32 %v124, %v148
  %150 = vdwg.mxu0
  %vm151 = vcmask 5120
  %v152 = vsel %vm151, %v149, -inf
  %v153 = vrot.slane %v152, 4
  %v154 = vmax.f32 %v152, %v153
  %v155 = vrot.slane %v154, 2
  %v156 = vmax.f32 %v154, %v155
  %v157 = vrot.slane %v156, 1
  %v158 = vmax.f32 %v156, %v157
  %v159 = vsub.f32 %v149, %v158
  %v160 = vmul.f32 %v159, 1.442695
  %v161 = vpow.pop %v160
  %v162 = vsel %vm151, %v161, 0.0
  %v163 = vrot.slane %v162, 4
  %v164 = vadd.f32 %v162, %v163
  %v165 = vrot.slane %v164, 2
  %v166 = vadd.f32 %v164, %v165
  %v167 = vrot.slane %v166, 1
  %v168 = vadd.f32 %v166, %v167
  %v169 = vrcp.pop %v168
  %v170 = vmul.f32 %v168, %v169
  %v171 = vsub.f32 1.0, %v170
  %v172 = vmul.f32 %v169, %v171
  %v173 = vadd.f32 %v169, %v172
  %vm174 = vweird.f32 %v168
  %vm175 = vweird.f32 %v169
  %vm176 = vmor %vm174, %vm175
  %v177 = vsel %vm176, %v169, %v173
  %v178 = vand.u32 2147483647, %v168
  %vm179 = vcmp.eq.f32.partialorder %v178, 8.507059e+37
  %v180 = vand.u32 %v168, 2147483648
  %v181 = vor.u32 1.1754944e-38, %v180
  %v182 = vsel %vm179, %v181, %v177
  %v183 = vmul.f32 %v161, %v182
  %185 = vset.pattern.permute.xlu0 0
  %186 = vperm.xlu0 %185, %v183
  %v187 = vpop.permute.xlu0 %186
  %v189 = vmul.f32 %v187, %v107
  %v190 = vmul.f32 %v187, %v108
  %vm191 = vcmask 1045504
  %v192 = vsel %vm191, %v189, 0.0
  %v193 = vrot.slane %v192, 4
  %v194 = vadd.f32 %v192, %v193
  %v195 = vrot.slane %v194, 2
  %v196 = vadd.f32 %v194, %v195
  %v197 = vrot.slane %v196, 1
  %v198 = vadd.f32 %v196, %v197
  %v199 = vsel %vm191, %v190, 0.0
  %v200 = vrot.slane %v199, 4
  %v201 = vadd.f32 %v199, %v200
  %v202 = vrot.slane %v201, 2
  %v203 = vadd.f32 %v201, %v202
  %v204 = vrot.slane %v203, 1
  %v205 = vadd.f32 %v203, %v204
  %v206 = vxor.u32 %v198, 2147483648
  %v207 = vxor.u32 %v205, 2147483648
  %v208 = vmul.f32 %v206, 1.442695
  %v209 = vpow.pop %v208
  %v210 = vmul.f32 %v207, 1.442695
  %v211 = vpow.pop %v210
  %v212 = vadd.f32 %v209, 1.0
  %v213 = vadd.f32 %v211, 1.0
  %v214 = vrcp.pop %v212
  %v215 = vmul.f32 %v212, %v214
  %v216 = vsub.f32 1.0, %v215
  %v217 = vmul.f32 %v214, %v216
  %v218 = vadd.f32 %v214, %v217
  %vm219 = vweird.f32 %v212
  %vm220 = vweird.f32 %v214
  %vm221 = vmor %vm219, %vm220
  %v222 = vsel %vm221, %v214, %v218
  %v223 = vand.u32 2147483647, %v212
  %vm224 = vcmp.eq.f32.partialorder %v223, 8.507059e+37
  %v225 = vand.u32 %v212, 2147483648
  %v226 = vor.u32 1.1754944e-38, %v225
  %v227 = vsel %vm224, %v226, %v222
  %v228 = vmul.f32 1.0, %v227
  %v229 = vrcp.pop %v213
  %v230 = vmul.f32 %v213, %v229
  %v231 = vsub.f32 1.0, %v230
  %v232 = vmul.f32 %v229, %v231
  %v233 = vadd.f32 %v229, %v232
  %vm234 = vweird.f32 %v213
  %vm235 = vweird.f32 %v229
  %vm236 = vmor %vm234, %vm235
  %v237 = vsel %vm236, %v229, %v233
  %v238 = vand.u32 2147483647, %v213
  %vm239 = vcmp.eq.f32.partialorder %v238, 8.507059e+37
  %v240 = vand.u32 %v213, 2147483648
  %v241 = vor.u32 1.1754944e-38, %v240
  %v242 = vsel %vm239, %v241, %v237
  %v243 = vmul.f32 1.0, %v242
  %v244 = vmul.f32 %v228, %v20
  %v245 = vmul.f32 %v243, %v21
  %v246 = vmul.f32 %v228, %v22
  %v247 = vmul.f32 %v243, %v23
  %v248 = vadd.f32 %v244, %v245
  %249 = vadd.xlane.f32.xlu0 %v248
  %v250 = vpop.xlane.xlu0 %249
  %v251 = vsel %vm41, %v246, 0.0
  %v252 = vsel %vm41, %v247, 0.0
  %v253 = vadd.f32 %v251, %v252
  %254 = vadd.xlane.f32.xlu0 %v253
  %v255 = vpop.xlane.xlu0 %254
  %v256 = vmul.f32 %v250, 0.00390625
  %v257 = vmul.f32 %v255, 0.00390625
  %vm258 = vcmask 7168
  %259 = vst.msk [vmem:[%s3] sm:$0xff] %vm258, %v256
  %vm260 = vcmask 3072
  %261 = vst.msk [vmem:[%s3 + $0x8] sm:$0xf] %vm260, %v257
  %s262 = scalar_lea.vmem %s0, 32
  %v263 = vld [vmem:[%s262] sm:$0xff]
  %v264 = vld [vmem:[%s262 + $0x8] sm:$0xff]
  %v265 = vld [vmem:[%s262 + $0x10] sm:$0xf]
  %v266 = vld [vmem:[%s262 + $0x18] sm:$0xf]
  %v268 = vsel %vm41, %v265, 0
  %v271 = vsel %vm41, %v266, 0
  %273 = vmatpush.msra.mxu0 0.0
  %274 = vmatpush.msra.mxu0 0.0
  %275 = vmatpush.msra.mxu0 0.0
  %276 = vmatpush.msra.mxu0 0.0
  %277 = vmatpush.msra.mxu0 0.0
  %278 = vmatpush.msra.mxu0 0.0
  %279 = vmatpush.msra.mxu0 0.0
  %280 = vmatpush.msra.mxu0 0.0
  %281 = vmatpush.msra.mxu0 0.0
  %282 = vmatpush.msra.mxu0 0.0
  %283 = vmatpush.msra.mxu0 0.0
  %284 = vmatpush.msra.mxu0 0.0
  %285 = vmatpush.msra.mxu0 0.0
  %286 = vmatpush.msra.mxu0 0.0
  %287 = vmatpush.msra.mxu0 %v268
  %288 = vmatpush.msra.mxu0 %v263
  %289 = vmatmul.f32.gmra.mxu0 %v36
  %v290 = vpop.f32.mrf.mxu0
  %v291 = vadd.f32 %v27, %v290
  %292 = vmatmul.f32.gmra.mxu0 %v39
  %v293 = vpop.f32.mrf.mxu0
  %v294 = vadd.f32 %v32, %v293
  %295 = vdwg.mxu0
  %296 = vmatpush.msra.mxu0 0.0
  %297 = vmatpush.msra.mxu0 0.0
  %298 = vmatpush.msra.mxu0 0.0
  %299 = vmatpush.msra.mxu0 0.0
  %300 = vmatpush.msra.mxu0 0.0
  %301 = vmatpush.msra.mxu0 0.0
  %302 = vmatpush.msra.mxu0 0.0
  %303 = vmatpush.msra.mxu0 0.0
  %304 = vmatpush.msra.mxu0 0.0
  %305 = vmatpush.msra.mxu0 0.0
  %306 = vmatpush.msra.mxu0 0.0
  %307 = vmatpush.msra.mxu0 0.0
  %308 = vmatpush.msra.mxu0 0.0
  %309 = vmatpush.msra.mxu0 0.0
  %310 = vmatpush.msra.mxu0 %v271
  %311 = vmatpush.msra.mxu0 %v264
  %312 = vmatmul.f32.gmra.mxu0 %v36
  %v313 = vpop.f32.mrf.mxu0
  %v314 = vadd.f32 %v27, %v313
  %315 = vmatmul.f32.gmra.mxu0 %v39
  %v316 = vpop.f32.mrf.mxu0
  %v317 = vadd.f32 %v32, %v316
  %318 = vdwg.mxu0
  %v323 = vrot.slane %v291, 6
  %v324 = vrot.slane %v294, 6
  %v325 = vsel %vm98, %v323, %v324
  %v326 = vrot.slane %v314, 6
  %v327 = vrot.slane %v317, 6
  %v328 = vsel %vm98, %v326, %v327
  %v331 = vmul.f32 %v291, %v325
  %v332 = vmul.f32 %v314, %v328
  %v333 = vadd.f32 %v263, %v264
  %334 = vadd.xlane.f32.xlu0 %v333
  %v335 = vpop.xlane.xlu0 %334
  %v336 = vsel %vm41, %v265, 0.0
  %v337 = vsel %vm41, %v266, 0.0
  %v338 = vadd.f32 %v336, %v337
  %339 = vadd.xlane.f32.xlu0 %v338
  %v340 = vpop.xlane.xlu0 %339
  %v342 = vsel %vm41, %v340, 0
  %344 = vmatpush.msra.mxu0 0.0
  %345 = vmatpush.msra.mxu0 0.0
  %346 = vmatpush.msra.mxu0 0.0
  %347 = vmatpush.msra.mxu0 0.0
  %348 = vmatpush.msra.mxu0 0.0
  %349 = vmatpush.msra.mxu0 0.0
  %350 = vmatpush.msra.mxu0 0.0
  %351 = vmatpush.msra.mxu0 0.0
  %352 = vmatpush.msra.mxu0 0.0
  %353 = vmatpush.msra.mxu0 0.0
  %354 = vmatpush.msra.mxu0 0.0
  %355 = vmatpush.msra.mxu0 0.0
  %356 = vmatpush.msra.mxu0 0.0
  %357 = vmatpush.msra.mxu0 0.0
  %358 = vmatpush.msra.mxu0 %v342
  %359 = vmatpush.msra.mxu0 %v335
  %360 = vmatmul.f32.gmra.mxu0 %v126
  %v361 = vpop.f32.mrf.mxu0
  %v362 = vadd.f32 %v124, %v361
  %363 = vdwg.mxu0
  %v364 = vsel %vm151, %v362, -inf
  %v365 = vrot.slane %v364, 4
  %v366 = vmax.f32 %v364, %v365
  %v367 = vrot.slane %v366, 2
  %v368 = vmax.f32 %v366, %v367
  %v369 = vrot.slane %v368, 1
  %v370 = vmax.f32 %v368, %v369
  %v371 = vsub.f32 %v362, %v370
  %v372 = vmul.f32 %v371, 1.442695
  %v373 = vpow.pop %v372
  %v374 = vsel %vm151, %v373, 0.0
  %v375 = vrot.slane %v374, 4
  %v376 = vadd.f32 %v374, %v375
  %v377 = vrot.slane %v376, 2
  %v378 = vadd.f32 %v376, %v377
  %v379 = vrot.slane %v378, 1
  %v380 = vadd.f32 %v378, %v379
  %v381 = vrcp.pop %v380
  %v382 = vmul.f32 %v380, %v381
  %v383 = vsub.f32 1.0, %v382
  %v384 = vmul.f32 %v381, %v383
  %v385 = vadd.f32 %v381, %v384
  %vm386 = vweird.f32 %v380
  %vm387 = vweird.f32 %v381
  %vm388 = vmor %vm386, %vm387
  %v389 = vsel %vm388, %v381, %v385
  %v390 = vand.u32 2147483647, %v380
  %vm391 = vcmp.eq.f32.partialorder %v390, 8.507059e+37
  %v392 = vand.u32 %v380, 2147483648
  %v393 = vor.u32 1.1754944e-38, %v392
  %v394 = vsel %vm391, %v393, %v389
  %v395 = vmul.f32 %v373, %v394
  %397 = vset.pattern.permute.xlu0 0
  %398 = vperm.xlu0 %397, %v395
  %v399 = vpop.permute.xlu0 %398
  %v401 = vmul.f32 %v399, %v331
  %v402 = vmul.f32 %v399, %v332
  %v403 = vsel %vm191, %v401, 0.0
  %v404 = vrot.slane %v403, 4
  %v405 = vadd.f32 %v403, %v404
  %v406 = vrot.slane %v405, 2
  %v407 = vadd.f32 %v405, %v406
  %v408 = vrot.slane %v407, 1
  %v409 = vadd.f32 %v407, %v408
  %v410 = vsel %vm191, %v402, 0.0
  %v411 = vrot.slane %v410, 4
  %v412 = vadd.f32 %v410, %v411
  %v413 = vrot.slane %v412, 2
  %v414 = vadd.f32 %v412, %v413
  %v415 = vrot.slane %v414, 1
  %v416 = vadd.f32 %v414, %v415
  %v417 = vxor.u32 %v409, 2147483648
  %v418 = vxor.u32 %v416, 2147483648
  %v419 = vmul.f32 %v417, 1.442695
  %v420 = vpow.pop %v419
  %v421 = vmul.f32 %v418, 1.442695
  %v422 = vpow.pop %v421
  %v423 = vadd.f32 %v420, 1.0
  %v424 = vadd.f32 %v422, 1.0
  %v425 = vrcp.pop %v423
  %v426 = vmul.f32 %v423, %v425
  %v427 = vsub.f32 1.0, %v426
  %v428 = vmul.f32 %v425, %v427
  %v429 = vadd.f32 %v425, %v428
  %vm430 = vweird.f32 %v423
  %vm431 = vweird.f32 %v425
  %vm432 = vmor %vm430, %vm431
  %v433 = vsel %vm432, %v425, %v429
  %v434 = vand.u32 2147483647, %v423
  %vm435 = vcmp.eq.f32.partialorder %v434, 8.507059e+37
  %v436 = vand.u32 %v423, 2147483648
  %v437 = vor.u32 1.1754944e-38, %v436
  %v438 = vsel %vm435, %v437, %v433
  %v439 = vmul.f32 1.0, %v438
  %v440 = vrcp.pop %v424
  %v441 = vmul.f32 %v424, %v440
  %v442 = vsub.f32 1.0, %v441
  %v443 = vmul.f32 %v440, %v442
  %v444 = vadd.f32 %v440, %v443
  %vm445 = vweird.f32 %v424
  %vm446 = vweird.f32 %v440
  %vm447 = vmor %vm445, %vm446
  %v448 = vsel %vm447, %v440, %v444
  %v449 = vand.u32 2147483647, %v424
  %vm450 = vcmp.eq.f32.partialorder %v449, 8.507059e+37
  %v451 = vand.u32 %v424, 2147483648
  %v452 = vor.u32 1.1754944e-38, %v451
  %v453 = vsel %vm450, %v452, %v448
  %v454 = vmul.f32 1.0, %v453
  %v455 = vmul.f32 %v439, %v263
  %v456 = vmul.f32 %v454, %v264
  %v457 = vmul.f32 %v439, %v265
  %v458 = vmul.f32 %v454, %v266
  %v459 = vadd.f32 %v455, %v456
  %460 = vadd.xlane.f32.xlu0 %v459
  %v461 = vpop.xlane.xlu0 %460
  %v462 = vsel %vm41, %v457, 0.0
  %v463 = vsel %vm41, %v458, 0.0
  %v464 = vadd.f32 %v462, %v463
  %465 = vadd.xlane.f32.xlu0 %v464
  %v466 = vpop.xlane.xlu0 %465
  %v467 = vmul.f32 %v461, 0.00390625
  %v468 = vmul.f32 %v466, 0.00390625
  %s469 = scalar_lea.vmem %s3, 16
  %470 = vst.msk [vmem:[%s469] sm:$0xff] %vm258, %v467
  %471 = vst.msk [vmem:[%s469 + $0x8] sm:$0xf] %vm260, %v468
  // Predicated region
  $region14: #{spat_apnba_forward.1} parent=0 // pred_check
    _
  $region15: #{spat_apnba_forward.1} parent=0 // pred_check_branch
    %473 = sbr.rel (0) target = $region17
  $region16: #{spat_apnba_forward.1} parent=0 // pred_region
    _
  $region17: #{spat_apnba_forward.1} parent=0 // pred_fallthru
    _
  // Predicated region
  $region18: #{spat_apnba_forward.1} parent=0 // pred_check
    _
  $region19: #{spat_apnba_forward.1} parent=0 // pred_check_branch
    %475 = sbr.rel (0) target = $region21
  $region20: #{spat_apnba_forward.1} parent=0 // pred_region
    _
  $region21: #{spat_apnba_forward.1} parent=0 // pred_fallthru
    _

</llo_original>
